<compile_context>
chip_gen: v6e
topology: v6e:2x2x1
jax: 0.10.0
libtpu: 0.0.40
codegen_flags: <defaults>
</compile_context>

<pallas_src>
import jax
import jax.numpy as jnp
from jax.experimental import pallas as pl
from jax.experimental.pallas import tpu as pltpu


def _rotary_kernel(x_ref, cos_ref, sin_ref, o_ref):
    """out = x * cos + rotate_half(x) * sin   (sin arrives pre-signed)."""
    x = x_ref[...]                      # (S_tile, H, D)
    cos = cos_ref[...][:, None, :]      # (S_tile, 1, D) -> broadcast over heads
    sin = sin_ref[...][:, None, :]      # pre-signed: [-sin_left, sin_right]
    d = x.shape[-1]
    half = d // 2
    if d % 128 == 0:
        # Lane-aligned fast path: rotation runs on the XLU, essentially free
        # next to the VPU multiply-adds.  (shift by d/2: direction-agnostic)
        x_perm = pltpu.roll(x, shift=half, axis=x.ndim - 1)
    else:
        # Lane-sparse head dims: plain permutation via slices.  Sign is already
        # folded into the sin table, so no extra negate either way.
        x_perm = jnp.concatenate([x[..., half:], x[..., :half]], axis=-1)
    o_ref[...] = x * cos + x_perm * sin


def _rope_tables(seq_len, dim, offset, base, dtype):
    """cos and pre-signed sin tables of shape [seq_len, dim] for positions
    offset .. offset + seq_len - 1 (rows [offset:offset+seq_len] of the torch
    get_auxiliary_tensors tables)."""
    half = dim // 2
    buf = jnp.linspace(0.0, -1.0 + 2.0 / dim, half, dtype=jnp.float32)
    inv_freq = jnp.tile(jnp.power(jnp.float32(base), buf), 2)        # [dim]
    time_ix = jnp.arange(offset, offset + seq_len, dtype=jnp.float32)
    freqs = time_ix[:, None] * inv_freq[None, :]                     # [seq, dim]
    cos = jnp.cos(freqs)
    sin = jnp.sin(freqs)
    # Fold the rotate_half sign into the table:
    #   cat([-x_right, x_left]) * sin  ==  roll(x, dim//2) * cat([-sin_l, sin_r])
    sin_signed = jnp.concatenate([-sin[:, :half], sin[:, half:]], axis=-1)
    return cos.astype(dtype), sin_signed.astype(dtype)


def _choose_seq_tile(seq_len, row_bytes, target_bytes=2 * 1024 * 1024):
    """Largest seq tile (a multiple of 8 that divides seq_len, or seq_len
    itself) whose x block stays around `target_bytes`."""
    max_rows = max(1, target_bytes // max(row_bytes, 1))
    if seq_len <= max_rows:
        return seq_len
    tile = (max_rows // 8) * 8
    while tile >= 8:
        if seq_len % tile == 0:
            return tile
        tile -= 8
    return seq_len  # fallback: no suitable divisor -> whole seq in one block


def rotary_embeddings(x, offset: int = 0, base: int = 10000):
    """Apply rotary position embeddings.  x: [batch, seq, nhead, hid]."""
    B, S, H, D = x.shape
    assert D % 2 == 0, "head dim must be even for RoPE"
    cos, sin_signed = _rope_tables(S, D, offset, base, x.dtype)

    itemsize = jnp.dtype(x.dtype).itemsize
    s_tile = _choose_seq_tile(S, H * D * itemsize)
    grid = (B, S // s_tile)

    return pl.pallas_call(
        _rotary_kernel,
        out_shape=jax.ShapeDtypeStruct(x.shape, x.dtype),
        grid=grid,
        in_specs=[
            # x slab: batch dim squeezed, (S_tile, H, D) per grid step.
            pl.BlockSpec((None, s_tile, H, D), lambda b, s: (b, s, 0, 0)),
            pl.BlockSpec((s_tile, D), lambda b, s: (s, 0)),   # cos
            pl.BlockSpec((s_tile, D), lambda b, s: (s, 0)),   # sin (pre-signed)
        ],
        out_specs=pl.BlockSpec((None, s_tile, H, D), lambda b, s: (b, s, 0, 0)),
        compiler_params=pltpu.CompilerParams(
            dimension_semantics=("parallel", "parallel")),
    )(x, cos, sin_signed)


def _rotary_reference(x, offset: int = 0, base: int = 10000):
    """Pure-JAX reference mirroring the PyTorch module exactly."""
    B, S, H, D = x.shape
    half = D // 2
    buf = jnp.linspace(0.0, -1.0 + 2.0 / D, half, dtype=jnp.float32)
    inv_freq = jnp.tile(jnp.power(jnp.float32(base), buf), 2)
    time_ix = jnp.arange(S + offset, dtype=jnp.float32)
    freqs = time_ix[:, None] * inv_freq[None, :]
    cos = jnp.cos(freqs).astype(x.dtype)[None, offset:S + offset, None, :]
    sin = jnp.sin(freqs).astype(x.dtype)[None, offset:S + offset, None, :]
    x_left, x_right = x[..., :half], x[..., half:]
    x_rot = jnp.concatenate([-x_right, x_left], axis=-1)
    return x * cos + x_rot * sin


if __name__ == "__main__":
    key = jax.random.PRNGKey(0)
    k1, k2 = jax.random.split(key)

    # Small module-consistent shape: [batch, seq, nhead, hid] = [2, 8, 4, 32].
    # (D=32 is lane-sparse -> slice/concat permutation path.)
    x_small = jax.random.normal(k1, (2, 8, 4, 32), dtype=jnp.float32)
    out_small = jax.block_until_ready(rotary_embeddings(x_small, offset=0))
    ref_small = _rotary_reference(x_small, offset=0)
    assert out_small.shape == x_small.shape and out_small.dtype == x_small.dtype
    assert jnp.allclose(out_small, ref_small, atol=1e-5, rtol=1e-5), "small-shape mismatch"

    # Lane-dense fast path (D = 128 -> pltpu.roll on the XLU), nonzero offset.
    x_wide = jax.random.normal(k2, (2, 16, 2, 128), dtype=jnp.float32)
    out_wide = jax.block_until_ready(rotary_embeddings(x_wide, offset=3))
    ref_wide = _rotary_reference(x_wide, offset=3)
    assert jnp.allclose(out_wide, ref_wide, atol=1e-5, rtol=1e-5), "wide-shape mismatch"

    print("KERNEL_OK")
</pallas_src>

<mosaic_0001>
module attributes {stable_mosaic.version = 11 : i64} {
  func.func @_rotary_kernel(%arg0: i32, %arg1: i32, %arg2: memref<1x8x4x32xf32, #tpu.memory_space<vmem>>, %arg3: memref<8x32xf32, #tpu.memory_space<vmem>>, %arg4: memref<8x32xf32, #tpu.memory_space<vmem>>, %arg5: memref<1x8x4x32xf32, #tpu.memory_space<vmem>>) attributes {dimension_semantics = [#tpu.dimension_semantics<parallel>, #tpu.dimension_semantics<parallel>], iteration_bounds = array<i64: 2, 1>, scalar_prefetch = 0 : i64, scratch_operands = 0 : i64, tpu.core_type = #tpu.core_type<tc>, window_params = [{transform_indices = @transform_0, window_bounds = array<i64: 1, 8, 4, 32>}, {transform_indices = @transform_1, window_bounds = array<i64: 8, 32>}, {transform_indices = @transform_2, window_bounds = array<i64: 8, 32>}, {transform_indices = @transform_3, window_bounds = array<i64: 1, 8, 4, 32>}]} {
    %c0 = arith.constant 0 : index
    %c0_0 = arith.constant 0 : index
    %c0_1 = arith.constant 0 : index
    %c0_2 = arith.constant 0 : index
    %0 = vector.load %arg2[%c0, %c0_0, %c0_1, %c0_2] : memref<1x8x4x32xf32, #tpu.memory_space<vmem>>, vector<1x8x4x32xf32>
    %1 = vector.shape_cast %0 : vector<1x8x4x32xf32> to vector<8x4x32xf32>
    %c0_3 = arith.constant 0 : index
    %c0_4 = arith.constant 0 : index
    %2 = vector.load %arg3[%c0_3, %c0_4] : memref<8x32xf32, #tpu.memory_space<vmem>>, vector<8x32xf32>
    %3 = vector.shape_cast %2 : vector<8x32xf32> to vector<8x1x32xf32>
    %c0_5 = arith.constant 0 : index
    %c0_6 = arith.constant 0 : index
    %4 = vector.load %arg4[%c0_5, %c0_6] : memref<8x32xf32, #tpu.memory_space<vmem>>, vector<8x32xf32>
    %5 = vector.shape_cast %4 : vector<8x32xf32> to vector<8x1x32xf32>
    %6 = vector.extract_strided_slice %1 {offsets = [0, 0, 16], sizes = [8, 4, 16], strides = [1, 1, 1]} : vector<8x4x32xf32> to vector<8x4x16xf32>
    %7 = vector.extract_strided_slice %1 {offsets = [0, 0, 0], sizes = [8, 4, 16], strides = [1, 1, 1]} : vector<8x4x32xf32> to vector<8x4x16xf32>
    %8 = tpu.concatenate %6, %7 in 2 : vector<8x4x16xf32>, vector<8x4x16xf32> -> vector<8x4x32xf32>
    %9 = vector.broadcast %3 : vector<8x1x32xf32> to vector<8x4x32xf32>
    %10 = arith.mulf %1, %9 : vector<8x4x32xf32>
    %11 = vector.broadcast %5 : vector<8x1x32xf32> to vector<8x4x32xf32>
    %12 = arith.mulf %8, %11 : vector<8x4x32xf32>
    %13 = arith.addf %10, %12 : vector<8x4x32xf32>
    %c0_7 = arith.constant 0 : index
    %c0_8 = arith.constant 0 : index
    %c0_9 = arith.constant 0 : index
    %c0_10 = arith.constant 0 : index
    %14 = vector.load %arg5[%c0_7, %c0_8, %c0_9, %c0_10] : memref<1x8x4x32xf32, #tpu.memory_space<vmem>>, vector<1x8x4x32xf32>
    %15 = vector.shape_cast %14 : vector<1x8x4x32xf32> to vector<8x4x32xf32>
    %16 = vector.shape_cast %13 : vector<8x4x32xf32> to vector<1x8x4x32xf32>
    tpu.vector_store %arg5[%c0_7, %c0_8, %c0_9, %c0_10], %16 {strides = array<i32>} : memref<1x8x4x32xf32, #tpu.memory_space<vmem>>, vector<1x8x4x32xf32>,
    return
  }
  func.func @transform_0(%arg0: i32, %arg1: i32) -> (i32, i32, i32, i32) {
    %c0_i32 = arith.constant 0 : i32
    %c0_i32_0 = arith.constant 0 : i32
    %c0_i32_1 = arith.constant 0 : i32
    return %arg0, %arg1, %c0_i32, %c0_i32_0 : i32, i32, i32, i32
  }
  func.func @transform_1(%arg0: i32, %arg1: i32) -> (i32, i32) {
    %c0_i32 = arith.constant 0 : i32
    %c0_i32_0 = arith.constant 0 : i32
    return %arg1, %c0_i32 : i32, i32
  }
  func.func @transform_2(%arg0: i32, %arg1: i32) -> (i32, i32) {
    %c0_i32 = arith.constant 0 : i32
    %c0_i32_0 = arith.constant 0 : i32
    return %arg1, %c0_i32 : i32, i32
  }
  func.func @transform_3(%arg0: i32, %arg1: i32) -> (i32, i32, i32, i32) {
    %c0_i32 = arith.constant 0 : i32
    %c0_i32_0 = arith.constant 0 : i32
    %c0_i32_1 = arith.constant 0 : i32
    return %arg0, %arg1, %c0_i32, %c0_i32_0 : i32, i32, i32, i32
  }
}

</mosaic_0001>

<llo_original>
// kernel: tpu_custom_call.1
$region0: #{tpu_custom_call.1}
  #allocation0 [shape = 'u32[]', space=smem, size = 0x4, offset = 0x4, fixed_abs, tag = 'smem constant byte address 0x4 - core index']
  #allocation1 [shape = 'u32[144,128]{1,0:T(1,128)}', space=vmem, size = 0x12000, scoped, tag = 'internal scratch']
  %s0 = inlined_call_operand.hbm [shape: f32[2,8,4,32], index: 0, kind: input, shape index: {}]
  %s1 = inlined_call_operand.hbm [shape: f32[8,32], index: 1, kind: input, shape index: {}]
  %s2 = inlined_call_operand.hbm [shape: f32[8,32], index: 2, kind: input, shape index: {}]
  %s3 = inlined_call_operand.hbm [shape: f32[2,8,4,32], index: 3, kind: output, shape index: {}]
  %s4 = sld [smem:[#allocation0]]
  $region57: #{tpu_custom_call.1} parent=0
    _
  %s6 = ssub.s32 1, %s4
  %s7 = scalar_select 0, %s6, %s4
  $region1: #{tpu_custom_call.1} parent=0
    #allocation2 [shape = 'u8[32768]{0}', space=vmem, size = 0x8000, scoped, tag = 'input window, operand 0']
    #allocation3 [shape = 's32[2]{0}', space=sflag, size = 0x8, scoped, tag = 'scoped memory for tpu_custom_call.1']
    #allocation4 [shape = 's32[2]{0}', space=sflag, size = 0x8, scoped, tag = 'scoped memory for tpu_custom_call.1']
    #allocation5 [shape = 'u8[4096]{0}', space=vmem, size = 0x1000, scoped, tag = 'input window, operand 1, single buffered']
    #allocation6 [shape = 's32[1]{0}', space=sflag, size = 0x4, scoped, tag = 'scoped memory for tpu_custom_call.1']
    #allocation7 [shape = 'u8[4096]{0}', space=vmem, size = 0x1000, scoped, tag = 'input window, operand 2, single buffered']
    #allocation8 [shape = 'u8[32768]{0}', space=vmem, size = 0x8000, scoped, tag = 'output window, operand 0']
    %8 = vsyncpa [#allocation3], 0
    %s9 = scalar_lea.sflag [#allocation3], 1
    %10 = vsyncpa %s9, 0
    %11 = vsyncpa [#allocation6], 0
    %12 = vsyncpa [#allocation4], 0
    %s13 = scalar_lea.sflag [#allocation4], 1
    %14 = vsyncpa %s13, 0
    loop: start=0, step=1, limit=4
    $region2: #{tpu_custom_call.1} parent=1 // loop_pre_header
      _
    $region3: #{tpu_custom_call.1} parent=1 // loop_header
      %s16 = sphi 0, %s20
      %p17 = scmp.ge.s32.totalorder %s16, 4
      %s23 = sphi 0, %s35
      %s24 = sphi 0, %s31
      %s25 = sphi 0, %s23
      %s26 = sphi 0, %s24
      %s27 = sphi 0, %s25
      %s28 = sphi 0, %s26
      %s40 = sphi 0, %s42
      %s43 = sphi 0, %s40
      %s44 = sphi 0, %s43
      %s60 = sphi 0, %s44
      %s66 = sphi 0, %s68
      %s69 = sphi 0, %s66
      %s70 = sphi 0, %s69
      %s86 = sphi 0, %s70
      %s92 = sphi 0, %s94
      %s95 = sphi 0, %s92
      %s96 = sphi 0, %s95
      %s112 = sphi 0, %s96
      %s120 = sphi 0, %s122
      %s123 = sphi 0, %s120
      %s124 = sphi 0, %s123
      %s140 = sphi 0, %s124
    $region4: #{tpu_custom_call.1} parent=1 // loop_header_branch
      %19 = sbr.rel (%p17) target = $region8
    $region5: #{tpu_custom_call.1} parent=1 // loop_body
      %s21 = ssub.s32 %s16, 1
      %s22 = ssub.s32 %s16, 2
      %s29 = sadd.s32 1, %s24
      %p30 = scmp.ge.s32.totalorder %s29, 1
      %s31 = scalar_select %p30, 0, %s29
      %s32 = sadd.s32 1, %s23
      %s33 = scalar_select %p30, %s32, %s23
      %p34 = scmp.ge.s32.totalorder %s33, 2
      %s35 = scalar_select %p34, 0, %s33
      %s36 = ssub.s32 %s23, %s35
      %s37 = ssub.s32 %s24, %s31
      %s38 = sor.u32 %s36, %s37
      %p39 = scmp.eq.s32.totalorder %s38, 0
      %s41 = sadd.s32 %s40, 1
      %s42 = scalar_select %p39, %s40, %s41
      %p45 = pneg %p39
      %p46 = scmp.eq.s32.totalorder %s16, 1
      %p47 = por %p45, %p46
      %p48 = scmp.ne.s32.totalorder %s40, %s43
      %p49 = scmp.eq.s32.totalorder %s16, 0
      %p50 = por %p48, %p49
      %p51 = scmp.ne.s32.totalorder %s40, %s43
      %p52 = scmp.eq.s32.totalorder %s21, 1
      %p53 = por %p51, %p52
      %p54 = scmp.ne.s32.totalorder %s43, %s44
      %p55 = scmp.eq.s32.totalorder %s21, 0
      %p56 = por %p54, %p55
      %p57 = scmp.ne.s32.totalorder %s43, %s44
      %p58 = scmp.eq.s32.totalorder %s22, 1
      %p59 = por %p57, %p58
      %p61 = scmp.ne.s32.totalorder %s44, %s60
      %p62 = scmp.eq.s32.totalorder %s22, 0
      %p63 = por %p61, %p62
      %s64 = ssub.s32 %s24, %s31
      %p65 = scmp.eq.s32.totalorder %s64, 0
      %s67 = sadd.s32 %s66, 1
      %s68 = scalar_select %p65, %s66, %s67
      %p71 = pneg %p65
      %p72 = scmp.eq.s32.totalorder %s16, 1
      %p73 = por %p71, %p72
      %p74 = scmp.ne.s32.totalorder %s66, %s69
      %p75 = scmp.eq.s32.totalorder %s16, 0
      %p76 = por %p74, %p75
      %p77 = scmp.ne.s32.totalorder %s66, %s69
      %p78 = scmp.eq.s32.totalorder %s21, 1
      %p79 = por %p77, %p78
      %p80 = scmp.ne.s32.totalorder %s69, %s70
      %p81 = scmp.eq.s32.totalorder %s21, 0
      %p82 = por %p80, %p81
      %p83 = scmp.ne.s32.totalorder %s69, %s70
      %p84 = scmp.eq.s32.totalorder %s22, 1
      %p85 = por %p83, %p84
      %p87 = scmp.ne.s32.totalorder %s70, %s86
      %p88 = scmp.eq.s32.totalorder %s22, 0
      %p89 = por %p87, %p88
      %s90 = ssub.s32 %s24, %s31
      %p91 = scmp.eq.s32.totalorder %s90, 0
      %s93 = sadd.s32 %s92, 1
      %s94 = scalar_select %p91, %s92, %s93
      %p97 = pneg %p91
      %p98 = scmp.eq.s32.totalorder %s16, 1
      %p99 = por %p97, %p98
      %p100 = scmp.ne.s32.totalorder %s92, %s95
      %p101 = scmp.eq.s32.totalorder %s16, 0
      %p102 = por %p100, %p101
      %p103 = scmp.ne.s32.totalorder %s92, %s95
      %p104 = scmp.eq.s32.totalorder %s21, 1
      %p105 = por %p103, %p104
      %p106 = scmp.ne.s32.totalorder %s95, %s96
      %p107 = scmp.eq.s32.totalorder %s21, 0
      %p108 = por %p106, %p107
      %p109 = scmp.ne.s32.totalorder %s95, %s96
      %p110 = scmp.eq.s32.totalorder %s22, 1
      %p111 = por %p109, %p110
      %p113 = scmp.ne.s32.totalorder %s96, %s112
      %p114 = scmp.eq.s32.totalorder %s22, 0
      %p115 = por %p113, %p114
      %s116 = ssub.s32 %s23, %s35
      %s117 = ssub.s32 %s24, %s31
      %s118 = sor.u32 %s116, %s117
      %p119 = scmp.eq.s32.totalorder %s118, 0
      %s121 = sadd.s32 %s120, 1
      %s122 = scalar_select %p119, %s120, %s121
      %p125 = pneg %p119
      %p126 = scmp.eq.s32.totalorder %s16, 1
      %p127 = por %p125, %p126
      %p128 = scmp.ne.s32.totalorder %s120, %s123
      %p129 = scmp.eq.s32.totalorder %s16, 0
      %p130 = por %p128, %p129
      %p131 = scmp.ne.s32.totalorder %s120, %s123
      %p132 = scmp.eq.s32.totalorder %s21, 1
      %p133 = por %p131, %p132
      %p134 = scmp.ne.s32.totalorder %s123, %s124
      %p135 = scmp.eq.s32.totalorder %s21, 0
      %p136 = por %p134, %p135
      %p137 = scmp.ne.s32.totalorder %s123, %s124
      %p138 = scmp.eq.s32.totalorder %s22, 1
      %p139 = por %p137, %p138
      %p141 = scmp.ne.s32.totalorder %s124, %s140
      %p142 = scmp.eq.s32.totalorder %s22, 0
      %p143 = por %p141, %p142
      %p144 = scmp.le.s32.totalorder 1, %s16
      %p145 = scmp.lt.s32.totalorder %s16, 3
      %p146 = pnand %p144, %p145
      %p147 = pneg %p146
      // Predicated region
      $region9: #{tpu_custom_call.1} parent=5 // pred_check
        _
      $region10: #{tpu_custom_call.1} parent=5 // pred_check_branch
        %149 = sbr.rel (%p146) target = $region12
      $region11: #{tpu_custom_call.1} parent=5 // pred_region
        %s150 = ssub.s32 %s16, 1
        // Predicated region
        $region13: #{tpu_custom_call.1} parent=11 // pred_check
          %p151 = pneg %p82
        $region14: #{tpu_custom_call.1} parent=11 // pred_check_branch
          %153 = sbr.rel (%p151) target = $region16
        $region15: #{tpu_custom_call.1} parent=11 // pred_region
          %s155 = ssub.s32 128, 128
          %156 = vsyncadd [#allocation6], %s155
          %s157 = smul.addr %s26, 128
          %s158 = scalar_lea.hbm %s1, %s157
          %s160 = sshll.u32 [#allocation5], 4
          %s161 = int_to_ptr.vmem [resolvable:$true] %s160
          %163 = dma.hbm_to_vmem [thread:$0]  %s158, 128, %s161, [#allocation6]
        $region16: #{tpu_custom_call.1} parent=11 // pred_fallthru
          _
        // Predicated region
        $region17: #{tpu_custom_call.1} parent=11 // pred_check
          %p164 = pneg %p108
        $region18: #{tpu_custom_call.1} parent=11 // pred_check_branch
          %166 = sbr.rel (%p164) target = $region20
        $region19: #{tpu_custom_call.1} parent=11 // pred_region
          %s168 = ssub.s32 128, 128
          %169 = vsyncadd [#allocation6], %s168
          %s170 = smul.addr %s26, 128
          %s171 = scalar_lea.hbm %s2, %s170
          %s173 = sshll.u32 [#allocation7], 4
          %s174 = int_to_ptr.vmem [resolvable:$true] %s173
          %176 = dma.hbm_to_vmem [thread:$0]  %s171, 128, %s174, [#allocation6]
        $region20: #{tpu_custom_call.1} parent=11 // pred_fallthru
          _
      $region12: #{tpu_custom_call.1} parent=5 // pred_fallthru
        _
      %p177 = scmp.lt.s32.totalorder %s16, 2
      // Predicated region
      $region21: #{tpu_custom_call.1} parent=5 // pred_check
        %p178 = pneg %p177
      $region22: #{tpu_custom_call.1} parent=5 // pred_check_branch
        %180 = sbr.rel (%p178) target = $region24
      $region23: #{tpu_custom_call.1} parent=5 // pred_region
        // Predicated region
        $region25: #{tpu_custom_call.1} parent=23 // pred_check
          %p181 = pneg %p50
        $region26: #{tpu_custom_call.1} parent=23 // pred_check_branch
          %183 = sbr.rel (%p181) target = $region28
        $region27: #{tpu_custom_call.1} parent=23 // pred_region
          %s184 = sand.u32 %s40, 1
          %s185 = scalar_lea.sflag [#allocation3], %s184
          %s186 = sand.u32 %s40, 1
          %s187 = smul.addr %s186, 32
          %s188 = scalar_lea.vmem [#allocation2], %s187
          %s189 = smul.u32 8, %s24
          %s191 = ssub.s32 512, 512
          %192 = vsyncadd %s185, %s191
          %s193 = smul.addr %s23, 8
          %s194 = sadd.s32 %s189, %s193
          %s195 = smul.addr %s194, 64
          %s196 = scalar_lea.hbm %s0, %s195
          %s197 = sshll.u32 %s188, 4
          %s198 = int_to_ptr.vmem [resolvable:$true] %s197
          %203 = dma.hbm_to_vmem [thread:$0]  %s196, 512, %s198, %s185, 64, 64, 4
        $region28: #{tpu_custom_call.1} parent=23 // pred_fallthru
          _
      $region24: #{tpu_custom_call.1} parent=5 // pred_fallthru
        _
      %p204 = scmp.le.s32.totalorder 1, %s16
      %p205 = scmp.lt.s32.totalorder %s16, 3
      %p206 = pnand %p204, %p205
      %p207 = pneg %p206
      // Predicated region
      $region29: #{tpu_custom_call.1} parent=5 // pred_check
        _
      $region30: #{tpu_custom_call.1} parent=5 // pred_check_branch
        %209 = sbr.rel (%p206) target = $region32
      $region31: #{tpu_custom_call.1} parent=5 // pred_region
        %s210 = ssub.s32 %s16, 1
        %s211 = sand.u32 %s43, 1
        %s212 = scalar_lea.sflag [#allocation3], %s211
        %s213 = sand.u32 %s43, 1
        %s214 = smul.addr %s213, 32
        %s215 = scalar_lea.vmem [#allocation2], %s214
        // Predicated region
        $region33: #{tpu_custom_call.1} parent=31 // pred_check
          %p216 = pneg %p56
        $region34: #{tpu_custom_call.1} parent=31 // pred_check_branch
          %218 = sbr.rel (%p216) target = $region36
        $region35: #{tpu_custom_call.1} parent=31 // pred_region
          %219 = dma.done %s212, 512
        $region36: #{tpu_custom_call.1} parent=31 // pred_fallthru
          _
        // Predicated region
        $region37: #{tpu_custom_call.1} parent=31 // pred_check
          %p220 = pneg %p82
        $region38: #{tpu_custom_call.1} parent=31 // pred_check_branch
          %222 = sbr.rel (%p220) target = $region40
        $region39: #{tpu_custom_call.1} parent=31 // pred_region
          %223 = dma.done [#allocation6], 128
        $region40: #{tpu_custom_call.1} parent=31 // pred_fallthru
          _
        // Predicated region
        $region41: #{tpu_custom_call.1} parent=31 // pred_check
          %p224 = pneg %p108
        $region42: #{tpu_custom_call.1} parent=31 // pred_check_branch
          %226 = sbr.rel (%p224) target = $region44
        $region43: #{tpu_custom_call.1} parent=31 // pred_region
          %227 = dma.done [#allocation6], 128
        $region44: #{tpu_custom_call.1} parent=31 // pred_fallthru
          _
        %s228 = sand.u32 %s43, 1
        %s229 = scalar_lea.sflag [#allocation3], %s228
        %s230 = sand.u32 %s43, 1
        %s231 = smul.addr %s230, 32
        %s232 = scalar_lea.vmem [#allocation2], %s231
        %p233 = pneg %p56
        %p234 = pneg %p53
        %p235 = pneg %p82
        %p236 = pneg %p79
        %p237 = pneg %p108
        %p238 = pneg %p105
        %p239 = pneg %p136
        %p240 = pneg %p133
        %s241 = sand.u32 %s123, 1
        %s242 = scalar_lea.sflag [#allocation4], %s241
        %s243 = sand.u32 %s123, 1
        %s244 = smul.addr %s243, 32
        %s245 = scalar_lea.vmem [#allocation8], %s244
        %s246 = smul.u32 8, %s26
        %s247 = smul.u32 8, %s26
        %v248 = vld [vmem:[%s215] sm:$0xf]
        %v249 = vld [vmem:[%s215 + $0x4] sm:$0xf]
        %v250 = vld [vmem:[%s215 + $0x8] sm:$0xf]
        %v251 = vld [vmem:[%s215 + $0xc] sm:$0xf]
        %v252 = vld [vmem:[%s215 + $0x10] sm:$0xf]
        %v253 = vld [vmem:[%s215 + $0x14] sm:$0xf]
        %v254 = vld [vmem:[%s215 + $0x18] sm:$0xf]
        %v255 = vld [vmem:[%s215 + $0x1c] sm:$0xf]
        %v256 = vld [vmem:[#allocation5] sm:$0xff]
        %v258 = vcombine.high %v256, %v256
        %v260 = vunpack.c.l.s4 1966171168
        %v261 = vunpack.c.0.s8 %v260
        %v262 = vlaneseq
        %v263 = vshrl.u32 %v262, 7
        %v264 = vsub.s32 %v261, %v263
        %v265 = vrot.slane %v256, %v264
        %v267 = vunpack.c.l.s4 1966171168
        %v268 = vunpack.c.0.s8 %v267
        %v269 = vlaneseq
        %v270 = vshrl.u32 %v269, 7
        %v271 = vsub.s32 %v268, %v270
        %v272 = vrot.slane %v258, %v271
        %v273 = vcombine.high %v265, %v265
        %v274 = vcombine.high %v272, %v272
        %v276 = vunpack.c.l.s4 1966171168
        %v277 = vunpack.c.0.s8 %v276
        %v278 = vlaneseq
        %v279 = vshrl.u32 %v278, 7
        %v280 = vsub.s32 %v277, %v279
        %v281 = vrot.slane %v265, %v280
        %v283 = vunpack.c.l.s4 1966171168
        %v284 = vunpack.c.0.s8 %v283
        %v285 = vlaneseq
        %v286 = vshrl.u32 %v285, 7
        %v287 = vsub.s32 %v284, %v286
        %v288 = vrot.slane %v272, %v287
        %v290 = vunpack.c.l.s4 1966171168
        %v291 = vunpack.c.0.s8 %v290
        %v292 = vlaneseq
        %v293 = vshrl.u32 %v292, 7
        %v294 = vsub.s32 %v291, %v293
        %v295 = vrot.slane %v273, %v294
        %v297 = vunpack.c.l.s4 1966171168
        %v298 = vunpack.c.0.s8 %v297
        %v299 = vlaneseq
        %v300 = vshrl.u32 %v299, 7
        %v301 = vsub.s32 %v298, %v300
        %v302 = vrot.slane %v274, %v301
        %v303 = vcombine.high %v281, %v281
        %v304 = vcombine.high %v288, %v288
        %v305 = vcombine.high %v295, %v295
        %v306 = vcombine.high %v302, %v302
        %v307 = vld [vmem:[#allocation7] sm:$0xff]
        %v309 = vcombine.high %v307, %v307
        %v311 = vunpack.c.l.s4 1966171168
        %v312 = vunpack.c.0.s8 %v311
        %v313 = vlaneseq
        %v314 = vshrl.u32 %v313, 7
        %v315 = vsub.s32 %v312, %v314
        %v316 = vrot.slane %v307, %v315
        %v318 = vunpack.c.l.s4 1966171168
        %v319 = vunpack.c.0.s8 %v318
        %v320 = vlaneseq
        %v321 = vshrl.u32 %v320, 7
        %v322 = vsub.s32 %v319, %v321
        %v323 = vrot.slane %v309, %v322
        %v324 = vcombine.high %v316, %v316
        %v325 = vcombine.high %v323, %v323
        %v327 = vunpack.c.l.s4 1966171168
        %v328 = vunpack.c.0.s8 %v327
        %v329 = vlaneseq
        %v330 = vshrl.u32 %v329, 7
        %v331 = vsub.s32 %v328, %v330
        %v332 = vrot.slane %v316, %v331
        %v334 = vunpack.c.l.s4 1966171168
        %v335 = vunpack.c.0.s8 %v334
        %v336 = vlaneseq
        %v337 = vshrl.u32 %v336, 7
        %v338 = vsub.s32 %v335, %v337
        %v339 = vrot.slane %v323, %v338
        %v341 = vunpack.c.l.s4 1966171168
        %v342 = vunpack.c.0.s8 %v341
        %v343 = vlaneseq
        %v344 = vshrl.u32 %v343, 7
        %v345 = vsub.s32 %v342, %v344
        %v346 = vrot.slane %v324, %v345
        %v348 = vunpack.c.l.s4 1966171168
        %v349 = vunpack.c.0.s8 %v348
        %v350 = vlaneseq
        %v351 = vshrl.u32 %v350, 7
        %v352 = vsub.s32 %v349, %v351
        %v353 = vrot.slane %v325, %v352
        %v354 = vcombine.high %v332, %v332
        %v355 = vcombine.high %v339, %v339
        %v356 = vcombine.high %v346, %v346
        %v357 = vcombine.high %v353, %v353
        %366 = vrot.lane.b32.xlu0 %v248, 112
        %v367 = vpop.permute.xlu0 %366
        %368 = vrot.lane.b32.xlu0 %v249, 112
        %v369 = vpop.permute.xlu0 %368
        %370 = vrot.lane.b32.xlu0 %v250, 112
        %v371 = vpop.permute.xlu0 %370
        %372 = vrot.lane.b32.xlu0 %v251, 112
        %v373 = vpop.permute.xlu0 %372
        %374 = vrot.lane.b32.xlu0 %v252, 112
        %v375 = vpop.permute.xlu0 %374
        %376 = vrot.lane.b32.xlu0 %v253, 112
        %v377 = vpop.permute.xlu0 %376
        %378 = vrot.lane.b32.xlu0 %v254, 112
        %v379 = vpop.permute.xlu0 %378
        %380 = vrot.lane.b32.xlu0 %v255, 112
        %v381 = vpop.permute.xlu0 %380
        %390 = vrot.lane.b32.xlu0 %v248, 16
        %v391 = vpop.permute.xlu0 %390
        %392 = vrot.lane.b32.xlu0 %v249, 16
        %v393 = vpop.permute.xlu0 %392
        %394 = vrot.lane.b32.xlu0 %v250, 16
        %v395 = vpop.permute.xlu0 %394
        %396 = vrot.lane.b32.xlu0 %v251, 16
        %v397 = vpop.permute.xlu0 %396
        %398 = vrot.lane.b32.xlu0 %v252, 16
        %v399 = vpop.permute.xlu0 %398
        %400 = vrot.lane.b32.xlu0 %v253, 16
        %v401 = vpop.permute.xlu0 %400
        %402 = vrot.lane.b32.xlu0 %v254, 16
        %v403 = vpop.permute.xlu0 %402
        %404 = vrot.lane.b32.xlu0 %v255, 16
        %v405 = vpop.permute.xlu0 %404
        %vm414 = vcmask 130048
        %v415 = vsel %vm414, %v367, %v391
        %v416 = vsel %vm414, %v369, %v393
        %v417 = vsel %vm414, %v371, %v395
        %v418 = vsel %vm414, %v373, %v397
        %v419 = vsel %vm414, %v375, %v399
        %v420 = vsel %vm414, %v377, %v401
        %v421 = vsel %vm414, %v379, %v403
        %v422 = vsel %vm414, %v381, %v405
        %v423 = vlaneseq
        %v424 = vshrl.u32 %v423, 7
        %v425 = vsub.s32 0, %v424
        %v426 = vrot.slane %v281, %v425
        %v427 = vlaneseq
        %v428 = vshrl.u32 %v427, 7
        %v429 = vsub.s32 0, %v428
        %v430 = vrot.slane %v295, %v429
        %v431 = vlaneseq
        %v432 = vshrl.u32 %v431, 7
        %v433 = vsub.s32 0, %v432
        %v434 = vrot.slane %v303, %v433
        %v435 = vlaneseq
        %v436 = vshrl.u32 %v435, 7
        %v437 = vsub.s32 0, %v436
        %v438 = vrot.slane %v305, %v437
        %v439 = vlaneseq
        %v440 = vshrl.u32 %v439, 7
        %v441 = vsub.s32 0, %v440
        %v442 = vrot.slane %v288, %v441
        %v443 = vlaneseq
        %v444 = vshrl.u32 %v443, 7
        %v445 = vsub.s32 0, %v444
        %v446 = vrot.slane %v302, %v445
        %v447 = vlaneseq
        %v448 = vshrl.u32 %v447, 7
        %v449 = vsub.s32 0, %v448
        %v450 = vrot.slane %v304, %v449
        %v451 = vlaneseq
        %v452 = vshrl.u32 %v451, 7
        %v453 = vsub.s32 0, %v452
        %v454 = vrot.slane %v306, %v453
        %v463 = vmul.f32 %v248, %v426
        %v464 = vmul.f32 %v249, %v430
        %v465 = vmul.f32 %v250, %v434
        %v466 = vmul.f32 %v251, %v438
        %v467 = vmul.f32 %v252, %v442
        %v468 = vmul.f32 %v253, %v446
        %v469 = vmul.f32 %v254, %v450
        %v470 = vmul.f32 %v255, %v454
        %v471 = vlaneseq
        %v472 = vshrl.u32 %v471, 7
        %v473 = vsub.s32 0, %v472
        %v474 = vrot.slane %v332, %v473
        %v475 = vlaneseq
        %v476 = vshrl.u32 %v475, 7
        %v477 = vsub.s32 0, %v476
        %v478 = vrot.slane %v346, %v477
        %v479 = vlaneseq
        %v480 = vshrl.u32 %v479, 7
        %v481 = vsub.s32 0, %v480
        %v482 = vrot.slane %v354, %v481
        %v483 = vlaneseq
        %v484 = vshrl.u32 %v483, 7
        %v485 = vsub.s32 0, %v484
        %v486 = vrot.slane %v356, %v485
        %v487 = vlaneseq
        %v488 = vshrl.u32 %v487, 7
        %v489 = vsub.s32 0, %v488
        %v490 = vrot.slane %v339, %v489
        %v491 = vlaneseq
        %v492 = vshrl.u32 %v491, 7
        %v493 = vsub.s32 0, %v492
        %v494 = vrot.slane %v353, %v493
        %v495 = vlaneseq
        %v496 = vshrl.u32 %v495, 7
        %v497 = vsub.s32 0, %v496
        %v498 = vrot.slane %v355, %v497
        %v499 = vlaneseq
        %v500 = vshrl.u32 %v499, 7
        %v501 = vsub.s32 0, %v500
        %v502 = vrot.slane %v357, %v501
        %v511 = vmul.f32 %v415, %v474
        %v512 = vmul.f32 %v416, %v478
        %v513 = vmul.f32 %v417, %v482
        %v514 = vmul.f32 %v418, %v486
        %v515 = vmul.f32 %v419, %v490
        %v516 = vmul.f32 %v420, %v494
        %v517 = vmul.f32 %v421, %v498
        %v518 = vmul.f32 %v422, %v502
        %v519 = vadd.f32 %v463, %v511
        %v520 = vadd.f32 %v464, %v512
        %v521 = vadd.f32 %v465, %v513
        %v522 = vadd.f32 %v466, %v514
        %v523 = vadd.f32 %v467, %v515
        %v524 = vadd.f32 %v468, %v516
        %v525 = vadd.f32 %v469, %v517
        %v526 = vadd.f32 %v470, %v518
        %vm527 = vcmask 257024
        %528 = vst.msk [vmem:[%s245] sm:$0xf] %vm527, %v519
        %529 = vst.msk [vmem:[%s245 + $0x4] sm:$0xf] %vm527, %v520
        %530 = vst.msk [vmem:[%s245 + $0x8] sm:$0xf] %vm527, %v521
        %531 = vst.msk [vmem:[%s245 + $0xc] sm:$0xf] %vm527, %v522
        %532 = vst.msk [vmem:[%s245 + $0x10] sm:$0xf] %vm527, %v523
        %533 = vst.msk [vmem:[%s245 + $0x14] sm:$0xf] %vm527, %v524
        %534 = vst.msk [vmem:[%s245 + $0x18] sm:$0xf] %vm527, %v525
        %535 = vst.msk [vmem:[%s245 + $0x1c] sm:$0xf] %vm527, %v526
        %s536 = sand.u32 %s123, 1
        %s537 = scalar_lea.sflag [#allocation4], %s536
        %s538 = sand.u32 %s123, 1
        %s539 = smul.addr %s538, 32
        %s540 = scalar_lea.vmem [#allocation8], %s539
        // Predicated region
        $region45: #{tpu_custom_call.1} parent=31 // pred_check
          %p541 = pneg %p133
        $region46: #{tpu_custom_call.1} parent=31 // pred_check_branch
          %543 = sbr.rel (%p541) target = $region48
        $region47: #{tpu_custom_call.1} parent=31 // pred_region
          %s544 = smul.u32 8, %s26
          %s546 = ssub.s32 512, 512
          %547 = vsyncadd %s537, %s546
          %s548 = smul.addr %s25, 8
          %s549 = sadd.s32 %s544, %s548
          %s550 = smul.addr %s549, 64
          %s551 = scalar_lea.hbm %s3, %s550
          %s552 = sshll.u32 %s540, 4
          %s553 = int_to_ptr.vmem [resolvable:$true] %s552
          %558 = dma.vmem_to_hbm [thread:$0]  %s553, 512, %s551, %s537, 64, 64, 4
        $region48: #{tpu_custom_call.1} parent=31 // pred_fallthru
          _
      $region32: #{tpu_custom_call.1} parent=5 // pred_fallthru
        _
      %p559 = scmp.le.s32.totalorder 2, %s16
      // Predicated region
      $region49: #{tpu_custom_call.1} parent=5 // pred_check
        %p560 = pneg %p559
      $region50: #{tpu_custom_call.1} parent=5 // pred_check_branch
        %562 = sbr.rel (%p560) target = $region52
      $region51: #{tpu_custom_call.1} parent=5 // pred_region
        %s563 = ssub.s32 %s16, 2
        // Predicated region
        $region53: #{tpu_custom_call.1} parent=51 // pred_check
          %p564 = pneg %p139
        $region54: #{tpu_custom_call.1} parent=51 // pred_check_branch
          %566 = sbr.rel (%p564) target = $region56
        $region55: #{tpu_custom_call.1} parent=51 // pred_region
          %s567 = sand.u32 %s124, 1
          %s568 = scalar_lea.sflag [#allocation4], %s567
          %s569 = sand.u32 %s124, 1
          %s570 = smul.addr %s569, 32
          %s571 = scalar_lea.vmem [#allocation8], %s570
          %572 = dma.done %s568, 512
        $region56: #{tpu_custom_call.1} parent=51 // pred_fallthru
          _
      $region52: #{tpu_custom_call.1} parent=5 // pred_fallthru
        _
    $region6: #{tpu_custom_call.1} parent=1 // loop_footer
      %s20 = sadd.s32 1, %s16
    $region7: #{tpu_custom_call.1} parent=1 // loop_footer_branch
      %15 = sbr.rel target = $region3
    $region8: #{tpu_custom_call.1} parent=1 // loop_exit
      _
    %573 = vsyncpa [#allocation3], 1
    %s574 = scalar_lea.sflag [#allocation3], 1
    %575 = vsyncpa %s574, 1
    %576 = vsyncpa [#allocation6], 1
    %577 = vsyncpa [#allocation4], 1
    %s578 = scalar_lea.sflag [#allocation4], 1
    %579 = vsyncpa %s578, 1

</llo_original>
